<compile_context>
chip_gen: v5e
topology: v5e:2x2
jax: 0.10.0
libtpu: 0.0.40
codegen_flags: <defaults>
</compile_context>

<pallas_src>
import math

import jax
import jax.numpy as jnp
from jax.experimental import pallas as pl
from jax.experimental.pallas import tpu as pltpu


def _round_up(n, m):
    return ((n + m - 1) // m) * m


def _batch_tile(n, target):
    """Row tile along the (packed) batch axis.

    Multiple of 8 (or the whole extent when tiny), capped so the grid has at
    least two steps when there is enough work (lets the "parallel" axis shard
    across both TensorCores on v7x)."""
    if n <= 8:
        return n
    tile = _round_up(min(target, n), 8)
    if tile >= n and n > 16:
        tile = _round_up(pl.cdiv(n, 2), 8)
    return tile


def _block_diag(w, n):
    """(kin, kout) -> (n*kin, n*kout) block-diagonal (n copies of w on the diag)."""
    return jnp.kron(jnp.eye(n, dtype=w.dtype), w)


def _mlp_kernel(x_ref, w1_ref, b1_ref, w2_ref, b2_ref, o_ref):
    # Linear 1 (MXU, f32 accumulation) + bias + tanh (EUP).
    h = jnp.dot(x_ref[...], w1_ref[...], preferred_element_type=jnp.float32)
    h = jnp.tanh(h + b1_ref[...])
    # Linear 2: keep h in f32 (do NOT downcast the accumulator).
    y = jnp.dot(h, w2_ref[...], preferred_element_type=jnp.float32)
    o_ref[...] = (y + b2_ref[...]).astype(o_ref.dtype)


def _pallas_mlp(x2d, w1, b1_row, w2, b2_row, tb):
    n, kin = x2d.shape
    hid = w1.shape[1]
    out_dim = w2.shape[1]
    grid = (pl.cdiv(n, tb),)
    return pl.pallas_call(
        _mlp_kernel,
        out_shape=jax.ShapeDtypeStruct((n, out_dim), x2d.dtype),
        grid=grid,
        in_specs=[
            # Streamed over the batch grid axis (double-buffered by Pallas).
            pl.BlockSpec((tb, kin), lambda i: (i, 0)),
            # Weights / biases: constant block index -> fetched once, VMEM-resident.
            pl.BlockSpec((kin, hid), lambda i: (0, 0)),
            pl.BlockSpec((1, hid), lambda i: (0, 0)),
            pl.BlockSpec((hid, out_dim), lambda i: (0, 0)),
            pl.BlockSpec((1, out_dim), lambda i: (0, 0)),
        ],
        out_specs=pl.BlockSpec((tb, out_dim), lambda i: (i, 0)),
        compiler_params=pltpu.CompilerParams(
            # Independent batch tiles -> shard grid steps across TCs on v7x.
            dimension_semantics=("parallel",),
            vmem_limit_bytes=32 * 1024 * 1024,
        ),
    )(x2d, w1, b1_row, w2, b2_row)


def parametrization_network_mlp(x, w1, b1, w2, b2, *, block_batch=8192):
    """x: (B, koopman_dim) -> (B, latent_dim) = tanh(x @ w1 + b1) @ w2 + b2."""
    B, kd = x.shape
    hd = w1.shape[1]
    ld = w2.shape[1]
    dt = x.dtype

    # Smallest pack factor such that pack * latent_dim is a multiple of 128 lanes.
    pack = 128 // math.gcd(128, ld)
    bd_bytes = 4 * pack * pack * (kd * hd + hd * ld)
    use_packed = (pack > 1) and (B % pack == 0) and (bd_bytes <= (4 << 20))

    if use_packed:
        # Lane-dense path: view x as (B/pack, pack*kd) and the output as
        # (B/pack, pack*ld) -- same row-major bytes, so reshapes are free --
        # and run block-diagonal weights so both matmuls stay lane-dense.
        n = B // pack
        x2d = x.reshape(n, pack * kd)
        w1p = _block_diag(w1, pack).astype(dt)
        w2p = _block_diag(w2, pack).astype(dt)
        b1p = jnp.tile(b1.reshape(-1), pack).reshape(1, pack * hd).astype(dt)
        b2p = jnp.tile(b2.reshape(-1), pack).reshape(1, pack * ld).astype(dt)
        tb = _batch_tile(n, max(8, block_batch // pack))
        out = _pallas_mlp(x2d, w1p, b1p, w2p, b2p, tb)
        return out.reshape(B, ld)

    # Fallback: plain (B, feature) layout.  Non-divisible batches are handled by
    # the grid itself (partial final block, masked store) -- no pad/slice copies.
    tb = _batch_tile(B, max(8, block_batch))
    return _pallas_mlp(
        x, w1.astype(dt), b1.reshape(1, hd).astype(dt),
        w2.astype(dt), b2.reshape(1, ld).astype(dt), tb)


def init_params(key, koopman_dim, hidden_dim, latent_dim, dtype=jnp.float32):
    """Deterministic init mirroring nn.Linear default: U(-1/sqrt(fan_in), 1/sqrt(fan_in))."""
    k1, k2, k3, k4 = jax.random.split(key, 4)
    bound1 = 1.0 / jnp.sqrt(jnp.asarray(koopman_dim, dtype))
    bound2 = 1.0 / jnp.sqrt(jnp.asarray(hidden_dim, dtype))
    w1 = jax.random.uniform(k1, (koopman_dim, hidden_dim), dtype, -bound1, bound1)
    b1 = jax.random.uniform(k2, (hidden_dim,), dtype, -bound1, bound1)
    w2 = jax.random.uniform(k3, (hidden_dim, latent_dim), dtype, -bound2, bound2)
    b2 = jax.random.uniform(k4, (latent_dim,), dtype, -bound2, bound2)
    return w1, b1, w2, b2


if __name__ == "__main__":
    koopman_dim, hidden_dim, latent_dim = 16, 32, 8
    key = jax.random.PRNGKey(0)
    kx1, kx2, kp = jax.random.split(key, 3)
    w1, b1, w2, b2 = init_params(kp, koopman_dim, hidden_dim, latent_dim)

    def ref(x):
        return jnp.tanh(x @ w1 + b1) @ w2 + b2

    # 1) Lane-dense packed path: B % 16 == 0 -> 40 packed rows, 2 grid steps
    #    (exercises the partial final block inside the packed grid too).
    x1 = jax.random.normal(kx1, (640, koopman_dim), jnp.float32)
    o1 = jax.block_until_ready(parametrization_network_mlp(x1, w1, b1, w2, b2))
    assert o1.shape == (640, latent_dim)
    assert jnp.allclose(o1, ref(x1), atol=1e-5, rtol=1e-5)

    # 2) Fallback path: B not a multiple of 16 -> non-divisible grid, masked tail.
    x2 = jax.random.normal(kx2, (100, koopman_dim), jnp.float32)
    o2 = jax.block_until_ready(parametrization_network_mlp(x2, w1, b1, w2, b2))
    assert o2.shape == (100, latent_dim)
    assert jnp.allclose(o2, ref(x2), atol=1e-5, rtol=1e-5)

    print("KERNEL_OK")
</pallas_src>

<mosaic_0001>
module attributes {stable_mosaic.version = 11 : i64} {
  func.func @_mlp_kernel(%arg0: i32, %arg1: memref<24x256xf32, #tpu.memory_space<vmem>>, %arg2: memref<256x512xf32, #tpu.memory_space<vmem>>, %arg3: memref<1x512xf32, #tpu.memory_space<vmem>>, %arg4: memref<512x128xf32, #tpu.memory_space<vmem>>, %arg5: memref<1x128xf32, #tpu.memory_space<vmem>>, %arg6: memref<24x128xf32, #tpu.memory_space<vmem>>) attributes {dimension_semantics = [#tpu.dimension_semantics<parallel>], iteration_bounds = array<i64: 2>, scalar_prefetch = 0 : i64, scratch_operands = 0 : i64, tpu.core_type = #tpu.core_type<tc>, window_params = [{transform_indices = @transform_0, window_bounds = array<i64: 24, 256>}, {pipeline_mode = #tpu.pipeline_mode<synchronous>, transform_indices = @transform_1, window_bounds = array<i64: 256, 512>}, {pipeline_mode = #tpu.pipeline_mode<synchronous>, transform_indices = @transform_2, window_bounds = array<i64: 1, 512>}, {pipeline_mode = #tpu.pipeline_mode<synchronous>, transform_indices = @transform_3, window_bounds = array<i64: 512, 128>}, {pipeline_mode = #tpu.pipeline_mode<synchronous>, transform_indices = @transform_4, window_bounds = array<i64: 1, 128>}, {transform_indices = @transform_5, window_bounds = array<i64: 24, 128>}]} {
    %c0 = arith.constant 0 : index
    %c0_0 = arith.constant 0 : index
    %0 = vector.load %arg1[%c0, %c0_0] : memref<24x256xf32, #tpu.memory_space<vmem>>, vector<24x256xf32>
    %c0_1 = arith.constant 0 : index
    %c0_2 = arith.constant 0 : index
    %1 = vector.load %arg2[%c0_1, %c0_2] : memref<256x512xf32, #tpu.memory_space<vmem>>, vector<256x512xf32>
    %cst = arith.constant dense<0.000000e+00> : vector<24x512xf32>
    %2 = tpu.matmul %0, %1, %cst {dimension_numbers = #tpu.dot_dimension_numbers<[1], [0], [0], [1], [0, 0, 1, 1], [], []>} : vector<24x256xf32>, vector<256x512xf32>, vector<24x512xf32> -> vector<24x512xf32>
    %c0_3 = arith.constant 0 : index
    %c0_4 = arith.constant 0 : index
    %3 = vector.load %arg3[%c0_3, %c0_4] : memref<1x512xf32, #tpu.memory_space<vmem>>, vector<1x512xf32>
    %4 = vector.broadcast %3 : vector<1x512xf32> to vector<24x512xf32>
    %5 = arith.addf %2, %4 : vector<24x512xf32>
    %6 = math.tanh %5 : vector<24x512xf32>
    %c0_5 = arith.constant 0 : index
    %c0_6 = arith.constant 0 : index
    %7 = vector.load %arg4[%c0_5, %c0_6] : memref<512x128xf32, #tpu.memory_space<vmem>>, vector<512x128xf32>
    %cst_7 = arith.constant dense<0.000000e+00> : vector<24x128xf32>
    %8 = tpu.matmul %6, %7, %cst_7 {dimension_numbers = #tpu.dot_dimension_numbers<[1], [0], [0], [1], [0, 0, 1, 1], [], []>} : vector<24x512xf32>, vector<512x128xf32>, vector<24x128xf32> -> vector<24x128xf32>
    %c0_8 = arith.constant 0 : index
    %c0_9 = arith.constant 0 : index
    %9 = vector.load %arg5[%c0_8, %c0_9] : memref<1x128xf32, #tpu.memory_space<vmem>>, vector<1x128xf32>
    %10 = vector.broadcast %9 : vector<1x128xf32> to vector<24x128xf32>
    %11 = arith.addf %8, %10 : vector<24x128xf32>
    %c0_10 = arith.constant 0 : index
    %c0_11 = arith.constant 0 : index
    %12 = vector.load %arg6[%c0_10, %c0_11] : memref<24x128xf32, #tpu.memory_space<vmem>>, vector<24x128xf32>
    tpu.vector_store %arg6[%c0_10, %c0_11], %11 {strides = array<i32>} : memref<24x128xf32, #tpu.memory_space<vmem>>, vector<24x128xf32>,
    return
  }
  func.func @transform_0(%arg0: i32) -> (i32, i32) {
    %c0_i32 = arith.constant 0 : i32
    %c0_i32_0 = arith.constant 0 : i32
    return %arg0, %c0_i32 : i32, i32
  }
  func.func @transform_1(%arg0: i32) -> (i32, i32) {
    %c0_i32 = arith.constant 0 : i32
    %c0_i32_0 = arith.constant 0 : i32
    %c0_i32_1 = arith.constant 0 : i32
    return %c0_i32, %c0_i32_0 : i32, i32
  }
  func.func @transform_2(%arg0: i32) -> (i32, i32) {
    %c0_i32 = arith.constant 0 : i32
    %c0_i32_0 = arith.constant 0 : i32
    %c0_i32_1 = arith.constant 0 : i32
    return %c0_i32, %c0_i32_0 : i32, i32
  }
  func.func @transform_3(%arg0: i32) -> (i32, i32) {
    %c0_i32 = arith.constant 0 : i32
    %c0_i32_0 = arith.constant 0 : i32
    %c0_i32_1 = arith.constant 0 : i32
    return %c0_i32, %c0_i32_0 : i32, i32
  }
  func.func @transform_4(%arg0: i32) -> (i32, i32) {
    %c0_i32 = arith.constant 0 : i32
    %c0_i32_0 = arith.constant 0 : i32
    %c0_i32_1 = arith.constant 0 : i32
    return %c0_i32, %c0_i32_0 : i32, i32
  }
  func.func @transform_5(%arg0: i32) -> (i32, i32) {
    %c0_i32 = arith.constant 0 : i32
    %c0_i32_0 = arith.constant 0 : i32
    return %arg0, %c0_i32 : i32, i32
  }
}

</mosaic_0001>

<llo_original>
// kernel: tpu_custom_call.1
$region0: #{tpu_custom_call.1}
  #allocation0 [shape = 'u32[]', space=smem, size = 0x4, offset = 0x4, fixed_abs, tag = 'smem constant byte address 0x4 - core index']
  #allocation1 [shape = 'u32[72,128]{1,0:T(1,128)}', space=vmem, size = 0x9000, scoped, tag = 'internal scratch']
  %s0 = inlined_call_operand.hbm [shape: f32[40,256], index: 0, kind: input, shape index: {}]
  %s1 = inlined_call_operand.hbm [shape: f32[256,512], index: 1, kind: input, shape index: {}]
  %s2 = inlined_call_operand.hbm [shape: f32[1,512], index: 2, kind: input, shape index: {}]
  %s3 = inlined_call_operand.hbm [shape: f32[512,128], index: 3, kind: input, shape index: {}]
  %s4 = inlined_call_operand.vmem [shape: f32[1,128], index: 4, kind: input, shape index: {}]
  %s5 = inlined_call_operand.hbm [shape: f32[40,128], index: 5, kind: output, shape index: {}]
  %s6 = sld [smem:[#allocation0]]
  $region69: #{tpu_custom_call.1} parent=0
    _
  %s8 = ssub.s32 1, %s6
  %s9 = scalar_select 0, %s8, %s6
  $region1: #{tpu_custom_call.1} parent=0
    #allocation2 [shape = 'u8[49152]{0}', space=vmem, size = 0xc000, scoped, tag = 'input window, operand 0']
    #allocation3 [shape = 's32[2]{0}', space=sflag, size = 0x8, scoped, tag = 'scoped memory for tpu_custom_call.1']
    #allocation4 [shape = 's32[2]{0}', space=sflag, size = 0x8, scoped, tag = 'scoped memory for tpu_custom_call.1']
    #allocation5 [shape = 'u8[524288]{0}', space=vmem, size = 0x80000, scoped, tag = 'input window, operand 1, single buffered']
    #allocation6 [shape = 's32[1]{0}', space=sflag, size = 0x4, scoped, tag = 'scoped memory for tpu_custom_call.1']
    #allocation7 [shape = 'u8[2048]{0}', space=vmem, size = 0x800, scoped, tag = 'input window, operand 2, single buffered']
    #allocation8 [shape = 'u8[262144]{0}', space=vmem, size = 0x40000, scoped, tag = 'input window, operand 3, single buffered']
    #allocation9 [shape = 's32[1]{0}', space=sflag, size = 0x4, scoped, tag = 'scoped memory for tpu_custom_call.1']
    #allocation10 [shape = 'u8[24576]{0}', space=vmem, size = 0x6000, scoped, tag = 'output window, operand 0']
    %10 = vsyncpa [#allocation3], 0
    %s11 = scalar_lea.sflag [#allocation3], 1
    %12 = vsyncpa %s11, 0
    %13 = vsyncpa [#allocation6], 0
    %14 = vsyncpa [#allocation9], 0
    %15 = vsyncpa [#allocation4], 0
    %s16 = scalar_lea.sflag [#allocation4], 1
    %17 = vsyncpa %s16, 0
    loop: start=0, step=1, limit=4
    $region2: #{tpu_custom_call.1} parent=1 // loop_pre_header
      _
    $region3: #{tpu_custom_call.1} parent=1 // loop_header
      %s19 = sphi 0, %s23
      %p20 = scmp.ge.s32.totalorder %s19, 4
      %s29 = sphi 0, %s31
      %s32 = sphi 0, %s29
      %s33 = sphi 0, %s32
      %s49 = sphi 0, %s33
      %s53 = sphi 0, %s53
      %s55 = sphi 0, %s53
      %s56 = sphi 0, %s55
      %s70 = sphi 0, %s56
      %s74 = sphi 0, %s74
      %s76 = sphi 0, %s74
      %s77 = sphi 0, %s76
      %s91 = sphi 0, %s77
      %s95 = sphi 0, %s95
      %s97 = sphi 0, %s95
      %s98 = sphi 0, %s97
      %s112 = sphi 0, %s98
      %s116 = sphi 0, %s116
      %s118 = sphi 0, %s116
      %s119 = sphi 0, %s118
      %s133 = sphi 0, %s119
      %s139 = sphi 0, %s141
      %s142 = sphi 0, %s139
      %s143 = sphi 0, %s142
      %s159 = sphi 0, %s143
    $region4: #{tpu_custom_call.1} parent=1 // loop_header_branch
      %22 = sbr.rel (%p20) target = $region8
    $region5: #{tpu_custom_call.1} parent=1 // loop_body
      %s24 = ssub.s32 %s19, 1
      %s25 = ssub.s32 %s19, 2
      %s26 = sadd.s32 %s19, 1
      %s27 = ssub.s32 %s19, %s26
      %p28 = scmp.eq.s32.totalorder %s27, 0
      %s30 = sadd.s32 %s29, 1
      %s31 = scalar_select %p28, %s29, %s30
      %p34 = pneg %p28
      %p35 = scmp.eq.s32.totalorder %s19, 1
      %p36 = por %p34, %p35
      %p37 = scmp.ne.s32.totalorder %s29, %s32
      %p38 = scmp.eq.s32.totalorder %s19, 0
      %p39 = por %p37, %p38
      %p40 = scmp.ne.s32.totalorder %s29, %s32
      %p41 = scmp.eq.s32.totalorder %s24, 1
      %p42 = por %p40, %p41
      %p43 = scmp.ne.s32.totalorder %s32, %s33
      %p44 = scmp.eq.s32.totalorder %s24, 0
      %p45 = por %p43, %p44
      %p46 = scmp.ne.s32.totalorder %s32, %s33
      %p47 = scmp.eq.s32.totalorder %s25, 1
      %p48 = por %p46, %p47
      %p50 = scmp.ne.s32.totalorder %s33, %s49
      %p51 = scmp.eq.s32.totalorder %s25, 0
      %p52 = por %p50, %p51
      %s54 = sadd.s32 %s53, 1
      %p57 = scmp.eq.s32.totalorder %s19, 1
      %p58 = scmp.ne.s32.totalorder %s53, %s55
      %p59 = scmp.eq.s32.totalorder %s19, 0
      %p60 = por %p58, %p59
      %p61 = scmp.ne.s32.totalorder %s53, %s55
      %p62 = scmp.eq.s32.totalorder %s24, 1
      %p63 = por %p61, %p62
      %p64 = scmp.ne.s32.totalorder %s55, %s56
      %p65 = scmp.eq.s32.totalorder %s24, 0
      %p66 = por %p64, %p65
      %p67 = scmp.ne.s32.totalorder %s55, %s56
      %p68 = scmp.eq.s32.totalorder %s25, 1
      %p69 = por %p67, %p68
      %p71 = scmp.ne.s32.totalorder %s56, %s70
      %p72 = scmp.eq.s32.totalorder %s25, 0
      %p73 = por %p71, %p72
      %s75 = sadd.s32 %s74, 1
      %p78 = scmp.eq.s32.totalorder %s19, 1
      %p79 = scmp.ne.s32.totalorder %s74, %s76
      %p80 = scmp.eq.s32.totalorder %s19, 0
      %p81 = por %p79, %p80
      %p82 = scmp.ne.s32.totalorder %s74, %s76
      %p83 = scmp.eq.s32.totalorder %s24, 1
      %p84 = por %p82, %p83
      %p85 = scmp.ne.s32.totalorder %s76, %s77
      %p86 = scmp.eq.s32.totalorder %s24, 0
      %p87 = por %p85, %p86
      %p88 = scmp.ne.s32.totalorder %s76, %s77
      %p89 = scmp.eq.s32.totalorder %s25, 1
      %p90 = por %p88, %p89
      %p92 = scmp.ne.s32.totalorder %s77, %s91
      %p93 = scmp.eq.s32.totalorder %s25, 0
      %p94 = por %p92, %p93
      %s96 = sadd.s32 %s95, 1
      %p99 = scmp.eq.s32.totalorder %s19, 1
      %p100 = scmp.ne.s32.totalorder %s95, %s97
      %p101 = scmp.eq.s32.totalorder %s19, 0
      %p102 = por %p100, %p101
      %p103 = scmp.ne.s32.totalorder %s95, %s97
      %p104 = scmp.eq.s32.totalorder %s24, 1
      %p105 = por %p103, %p104
      %p106 = scmp.ne.s32.totalorder %s97, %s98
      %p107 = scmp.eq.s32.totalorder %s24, 0
      %p108 = por %p106, %p107
      %p109 = scmp.ne.s32.totalorder %s97, %s98
      %p110 = scmp.eq.s32.totalorder %s25, 1
      %p111 = por %p109, %p110
      %p113 = scmp.ne.s32.totalorder %s98, %s112
      %p114 = scmp.eq.s32.totalorder %s25, 0
      %p115 = por %p113, %p114
      %s117 = sadd.s32 %s116, 1
      %p120 = scmp.eq.s32.totalorder %s19, 1
      %p121 = scmp.ne.s32.totalorder %s116, %s118
      %p122 = scmp.eq.s32.totalorder %s19, 0
      %p123 = por %p121, %p122
      %p124 = scmp.ne.s32.totalorder %s116, %s118
      %p125 = scmp.eq.s32.totalorder %s24, 1
      %p126 = por %p124, %p125
      %p127 = scmp.ne.s32.totalorder %s118, %s119
      %p128 = scmp.eq.s32.totalorder %s24, 0
      %p129 = por %p127, %p128
      %p130 = scmp.ne.s32.totalorder %s118, %s119
      %p131 = scmp.eq.s32.totalorder %s25, 1
      %p132 = por %p130, %p131
      %p134 = scmp.ne.s32.totalorder %s119, %s133
      %p135 = scmp.eq.s32.totalorder %s25, 0
      %p136 = por %p134, %p135
      %s137 = ssub.s32 %s19, %s26
      %p138 = scmp.eq.s32.totalorder %s137, 0
      %s140 = sadd.s32 %s139, 1
      %s141 = scalar_select %p138, %s139, %s140
      %p144 = pneg %p138
      %p145 = scmp.eq.s32.totalorder %s19, 1
      %p146 = por %p144, %p145
      %p147 = scmp.ne.s32.totalorder %s139, %s142
      %p148 = scmp.eq.s32.totalorder %s19, 0
      %p149 = por %p147, %p148
      %p150 = scmp.ne.s32.totalorder %s139, %s142
      %p151 = scmp.eq.s32.totalorder %s24, 1
      %p152 = por %p150, %p151
      %p153 = scmp.ne.s32.totalorder %s142, %s143
      %p154 = scmp.eq.s32.totalorder %s24, 0
      %p155 = por %p153, %p154
      %p156 = scmp.ne.s32.totalorder %s142, %s143
      %p157 = scmp.eq.s32.totalorder %s25, 1
      %p158 = por %p156, %p157
      %p160 = scmp.ne.s32.totalorder %s143, %s159
      %p161 = scmp.eq.s32.totalorder %s25, 0
      %p162 = por %p160, %p161
      %p163 = scmp.le.s32.totalorder 1, %s19
      %p164 = scmp.lt.s32.totalorder %s19, 3
      %p165 = pnand %p163, %p164
      %p166 = pneg %p165
      // Predicated region
      $region9: #{tpu_custom_call.1} parent=5 // pred_check
        _
      $region10: #{tpu_custom_call.1} parent=5 // pred_check_branch
        %168 = sbr.rel (%p165) target = $region12
      $region11: #{tpu_custom_call.1} parent=5 // pred_region
        %s169 = ssub.s32 %s19, 1
        // Predicated region
        $region13: #{tpu_custom_call.1} parent=11 // pred_check
          %p170 = pneg %p66
        $region14: #{tpu_custom_call.1} parent=11 // pred_check_branch
          %172 = sbr.rel (%p170) target = $region16
        $region15: #{tpu_custom_call.1} parent=11 // pred_region
          %174 = vsyncadd [#allocation6], 0
          %s175 = sshll.u32 %s1, 4
          %s176 = int_to_ptr.hbm [resolvable:$true] %s175
          %s177 = sshll.u32 [#allocation5], 4
          %s178 = int_to_ptr.vmem [resolvable:$true] %s177
          %183 = dma.hbm_to_vmem [thread:$0]  %s176, 16384, %s178, [#allocation6], 512, 512, 32
        $region16: #{tpu_custom_call.1} parent=11 // pred_fallthru
          _
        // Predicated region
        $region17: #{tpu_custom_call.1} parent=11 // pred_check
          %p184 = pneg %p87
        $region18: #{tpu_custom_call.1} parent=11 // pred_check_branch
          %186 = sbr.rel (%p184) target = $region20
        $region19: #{tpu_custom_call.1} parent=11 // pred_region
          %188 = vsyncadd [#allocation6], 0
          %s190 = sshll.u32 %s2, 4
          %s191 = int_to_ptr.hbm [resolvable:$true] %s190
          %s192 = sshll.u32 [#allocation7], 4
          %s193 = int_to_ptr.vmem [resolvable:$true] %s192
          %195 = dma.hbm_to_vmem [thread:$0]  %s191, 64, %s193, [#allocation6]
        $region20: #{tpu_custom_call.1} parent=11 // pred_fallthru
          _
        // Predicated region
        $region21: #{tpu_custom_call.1} parent=11 // pred_check
          %p196 = pneg %p108
        $region22: #{tpu_custom_call.1} parent=11 // pred_check_branch
          %198 = sbr.rel (%p196) target = $region24
        $region23: #{tpu_custom_call.1} parent=11 // pred_region
          %200 = vsyncadd [#allocation9], 0
          %s201 = sshll.u32 %s3, 4
          %s202 = int_to_ptr.hbm [resolvable:$true] %s201
          %s203 = sshll.u32 [#allocation8], 4
          %s204 = int_to_ptr.vmem [resolvable:$true] %s203
          %209 = dma.hbm_to_vmem [thread:$0]  %s202, 8192, %s204, [#allocation9], 128, 128, 8
        $region24: #{tpu_custom_call.1} parent=11 // pred_fallthru
          _
        // Predicated region
        $region25: #{tpu_custom_call.1} parent=11 // pred_check
          %p210 = pneg %p129
        $region26: #{tpu_custom_call.1} parent=11 // pred_check_branch
          %212 = sbr.rel (%p210) target = $region28
        $region27: #{tpu_custom_call.1} parent=11 // pred_region
          _
        $region28: #{tpu_custom_call.1} parent=11 // pred_fallthru
          _
      $region12: #{tpu_custom_call.1} parent=5 // pred_fallthru
        _
      %p213 = scmp.lt.s32.totalorder %s19, 2
      // Predicated region
      $region29: #{tpu_custom_call.1} parent=5 // pred_check
        %p214 = pneg %p213
      $region30: #{tpu_custom_call.1} parent=5 // pred_check_branch
        %216 = sbr.rel (%p214) target = $region32
      $region31: #{tpu_custom_call.1} parent=5 // pred_region
        // Predicated region
        $region33: #{tpu_custom_call.1} parent=31 // pred_check
          %p217 = pneg %p39
        $region34: #{tpu_custom_call.1} parent=31 // pred_check_branch
          %219 = sbr.rel (%p217) target = $region36
        $region35: #{tpu_custom_call.1} parent=31 // pred_region
          %s220 = sand.u32 %s29, 1
          %s221 = scalar_lea.sflag [#allocation3], %s220
          %s222 = sand.u32 %s29, 1
          %s223 = smul.addr %s222, 48
          %s224 = scalar_lea.vmem [#allocation2], %s223
          %s225 = smul.u32 3, %s19
          %s226 = ssub.s32 5, %s225
          %p227 = scmp.lt.s32.totalorder %s226, 3
          %s228 = scalar_select %p227, %s226, 3
          %s229 = smul.u32 8, %s228
          %s230 = smul.u32 %s229, 2
          %s231 = ssub.s32 48, %s230
          %s232 = sshll.u32 %s231, 4
          %233 = vsyncadd %s221, %s232
          %p234 = scmp.ne.s32.totalorder 0, %s230
          %s235 = smul.addr %s225, 2
          %s236 = smul.addr %s235, 8
          %s237 = scalar_lea.hbm %s0, %s236
          %s238 = smul.u32 16, %s228
          %s239 = sshll.u32 %s237, 4
          %s240 = int_to_ptr.hbm [resolvable:$true] %s239
          %s241 = sshll.u32 %s224, 4
          %s242 = int_to_ptr.vmem [resolvable:$true] %s241
          %s243 = sshll.u32 %s238, 4
          %247 = dma.hbm_to_vmem [thread:$0]  (%p234), %s240, %s243, %s242, %s221, 256, 256, 16
        $region36: #{tpu_custom_call.1} parent=31 // pred_fallthru
          _
      $region32: #{tpu_custom_call.1} parent=5 // pred_fallthru
        _
      %p248 = scmp.le.s32.totalorder 1, %s19
      %p249 = scmp.lt.s32.totalorder %s19, 3
      %p250 = pnand %p248, %p249
      %p251 = pneg %p250
      // Predicated region
      $region37: #{tpu_custom_call.1} parent=5 // pred_check
        _
      $region38: #{tpu_custom_call.1} parent=5 // pred_check_branch
        %253 = sbr.rel (%p250) target = $region40
      $region39: #{tpu_custom_call.1} parent=5 // pred_region
        %s254 = ssub.s32 %s19, 1
        %s255 = sand.u32 %s32, 1
        %s256 = scalar_lea.sflag [#allocation3], %s255
        %s257 = sand.u32 %s32, 1
        %s258 = smul.addr %s257, 48
        %s259 = scalar_lea.vmem [#allocation2], %s258
        // Predicated region
        $region41: #{tpu_custom_call.1} parent=39 // pred_check
          %p260 = pneg %p45
        $region42: #{tpu_custom_call.1} parent=39 // pred_check_branch
          %262 = sbr.rel (%p260) target = $region44
        $region43: #{tpu_custom_call.1} parent=39 // pred_region
          %264 = dma.done %s256, 768
        $region44: #{tpu_custom_call.1} parent=39 // pred_fallthru
          _
        // Predicated region
        $region45: #{tpu_custom_call.1} parent=39 // pred_check
          %p265 = pneg %p66
        $region46: #{tpu_custom_call.1} parent=39 // pred_check_branch
          %267 = sbr.rel (%p265) target = $region48
        $region47: #{tpu_custom_call.1} parent=39 // pred_region
          %269 = dma.done [#allocation6], 16384
        $region48: #{tpu_custom_call.1} parent=39 // pred_fallthru
          _
        // Predicated region
        $region49: #{tpu_custom_call.1} parent=39 // pred_check
          %p270 = pneg %p87
        $region50: #{tpu_custom_call.1} parent=39 // pred_check_branch
          %272 = sbr.rel (%p270) target = $region52
        $region51: #{tpu_custom_call.1} parent=39 // pred_region
          %274 = dma.done [#allocation6], 64
        $region52: #{tpu_custom_call.1} parent=39 // pred_fallthru
          _
        // Predicated region
        $region53: #{tpu_custom_call.1} parent=39 // pred_check
          %p275 = pneg %p108
        $region54: #{tpu_custom_call.1} parent=39 // pred_check_branch
          %277 = sbr.rel (%p275) target = $region56
        $region55: #{tpu_custom_call.1} parent=39 // pred_region
          %279 = dma.done [#allocation9], 8192
        $region56: #{tpu_custom_call.1} parent=39 // pred_fallthru
          _
        %s280 = sand.u32 %s32, 1
        %s281 = scalar_lea.sflag [#allocation3], %s280
        %s282 = sand.u32 %s32, 1
        %s283 = smul.addr %s282, 48
        %s284 = scalar_lea.vmem [#allocation2], %s283
        %p285 = pneg %p45
        %p286 = pneg %p42
        %p287 = pneg %p66
        %p288 = pneg %p63
        %p289 = pneg %p87
        %p290 = pneg %p84
        %p291 = pneg %p108
        %p292 = pneg %p105
        %p293 = pneg %p129
        %p294 = pneg %p126
        %p295 = pneg %p155
        %p296 = pneg %p152
        %s297 = sand.u32 %s142, 1
        %s298 = scalar_lea.sflag [#allocation4], %s297
        %s299 = sand.u32 %s142, 1
        %s300 = smul.addr %s299, 24
        %s301 = scalar_lea.vmem [#allocation10], %s300
        %s302 = smul.u32 3, %s24
        %s303 = ssub.s32 5, %s302
        %p304 = scmp.lt.s32.totalorder %s303, 3
        %s305 = scalar_select %p304, %s303, 3
        %s306 = smul.u32 8, %s305
        %s307 = smul.u32 %s306, 2
        %s308 = smul.u32 3, %s24
        %s309 = ssub.s32 5, %s308
        %p310 = scmp.lt.s32.totalorder %s309, 3
        %s311 = scalar_select %p310, %s309, 3
        %s312 = smul.u32 8, %s311
        %v313 = vld [vmem:[%s259] sm:$0xff]
        %v314 = vld [vmem:[%s259 + $0x8] sm:$0xff]
        %v315 = vld [vmem:[%s259 + $0x10] sm:$0xff]
        %v316 = vld [vmem:[%s259 + $0x18] sm:$0xff]
        %v317 = vld [vmem:[%s259 + $0x20] sm:$0xff]
        %v318 = vld [vmem:[%s259 + $0x28] sm:$0xff]
        %v319 = vld [vmem:[#allocation5] sm:$0xff]
        %v320 = vld [vmem:[#allocation5 + $0x8] sm:$0xff]
        %v321 = vld [vmem:[#allocation5 + $0x10] sm:$0xff]
        %v322 = vld [vmem:[#allocation5 + $0x18] sm:$0xff]
        %v323 = vld [vmem:[#allocation5 + $0x20] sm:$0xff]
        %v324 = vld [vmem:[#allocation5 + $0x28] sm:$0xff]
        %v325 = vld [vmem:[#allocation5 + $0x30] sm:$0xff]
        %v326 = vld [vmem:[#allocation5 + $0x38] sm:$0xff]
        %v327 = vld [vmem:[#allocation5 + $0x40] sm:$0xff]
        %v328 = vld [vmem:[#allocation5 + $0x48] sm:$0xff]
        %v329 = vld [vmem:[#allocation5 + $0x50] sm:$0xff]
        %v330 = vld [vmem:[#allocation5 + $0x58] sm:$0xff]
        %v331 = vld [vmem:[#allocation5 + $0x60] sm:$0xff]
        %v332 = vld [vmem:[#allocation5 + $0x68] sm:$0xff]
        %v333 = vld [vmem:[#allocation5 + $0x70] sm:$0xff]
        %v334 = vld [vmem:[#allocation5 + $0x78] sm:$0xff]
        %v335 = vld [vmem:[#allocation5 + $0x80] sm:$0xff]
        %v336 = vld [vmem:[#allocation5 + $0x88] sm:$0xff]
        %v337 = vld [vmem:[#allocation5 + $0x90] sm:$0xff]
        %v338 = vld [vmem:[#allocation5 + $0x98] sm:$0xff]
        %v339 = vld [vmem:[#allocation5 + $0xa0] sm:$0xff]
        %v340 = vld [vmem:[#allocation5 + $0xa8] sm:$0xff]
        %v341 = vld [vmem:[#allocation5 + $0xb0] sm:$0xff]
        %v342 = vld [vmem:[#allocation5 + $0xb8] sm:$0xff]
        %v343 = vld [vmem:[#allocation5 + $0xc0] sm:$0xff]
        %v344 = vld [vmem:[#allocation5 + $0xc8] sm:$0xff]
        %v345 = vld [vmem:[#allocation5 + $0xd0] sm:$0xff]
        %v346 = vld [vmem:[#allocation5 + $0xd8] sm:$0xff]
        %v347 = vld [vmem:[#allocation5 + $0xe0] sm:$0xff]
        %v348 = vld [vmem:[#allocation5 + $0xe8] sm:$0xff]
        %v349 = vld [vmem:[#allocation5 + $0xf0] sm:$0xff]
        %v350 = vld [vmem:[#allocation5 + $0xf8] sm:$0xff]
        %v351 = vld [vmem:[#allocation5 + $0x100] sm:$0xff]
        %v352 = vld [vmem:[#allocation5 + $0x108] sm:$0xff]
        %v353 = vld [vmem:[#allocation5 + $0x110] sm:$0xff]
        %v354 = vld [vmem:[#allocation5 + $0x118] sm:$0xff]
        %v355 = vld [vmem:[#allocation5 + $0x120] sm:$0xff]
        %v356 = vld [vmem:[#allocation5 + $0x128] sm:$0xff]
        %v357 = vld [vmem:[#allocation5 + $0x130] sm:$0xff]
        %v358 = vld [vmem:[#allocation5 + $0x138] sm:$0xff]
        %v359 = vld [vmem:[#allocation5 + $0x140] sm:$0xff]
        %v360 = vld [vmem:[#allocation5 + $0x148] sm:$0xff]
        %v361 = vld [vmem:[#allocation5 + $0x150] sm:$0xff]
        %v362 = vld [vmem:[#allocation5 + $0x158] sm:$0xff]
        %v363 = vld [vmem:[#allocation5 + $0x160] sm:$0xff]
        %v364 = vld [vmem:[#allocation5 + $0x168] sm:$0xff]
        %v365 = vld [vmem:[#allocation5 + $0x170] sm:$0xff]
        %v366 = vld [vmem:[#allocation5 + $0x178] sm:$0xff]
        %v367 = vld [vmem:[#allocation5 + $0x180] sm:$0xff]
        %v368 = vld [vmem:[#allocation5 + $0x188] sm:$0xff]
        %v369 = vld [vmem:[#allocation5 + $0x190] sm:$0xff]
        %v370 = vld [vmem:[#allocation5 + $0x198] sm:$0xff]
        %v371 = vld [vmem:[#allocation5 + $0x1a0] sm:$0xff]
        %v372 = vld [vmem:[#allocation5 + $0x1a8] sm:$0xff]
        %v373 = vld [vmem:[#allocation5 + $0x1b0] sm:$0xff]
        %v374 = vld [vmem:[#allocation5 + $0x1b8] sm:$0xff]
        %v375 = vld [vmem:[#allocation5 + $0x1c0] sm:$0xff]
        %v376 = vld [vmem:[#allocation5 + $0x1c8] sm:$0xff]
        %v377 = vld [vmem:[#allocation5 + $0x1d0] sm:$0xff]
        %v378 = vld [vmem:[#allocation5 + $0x1d8] sm:$0xff]
        %v379 = vld [vmem:[#allocation5 + $0x1e0] sm:$0xff]
        %v380 = vld [vmem:[#allocation5 + $0x1e8] sm:$0xff]
        %v381 = vld [vmem:[#allocation5 + $0x1f0] sm:$0xff]
        %v382 = vld [vmem:[#allocation5 + $0x1f8] sm:$0xff]
        %v383 = vld [vmem:[#allocation5 + $0x200] sm:$0xff]
        %v384 = vld [vmem:[#allocation5 + $0x208] sm:$0xff]
        %v385 = vld [vmem:[#allocation5 + $0x210] sm:$0xff]
        %v386 = vld [vmem:[#allocation5 + $0x218] sm:$0xff]
        %v387 = vld [vmem:[#allocation5 + $0x220] sm:$0xff]
        %v388 = vld [vmem:[#allocation5 + $0x228] sm:$0xff]
        %v389 = vld [vmem:[#allocation5 + $0x230] sm:$0xff]
        %v390 = vld [vmem:[#allocation5 + $0x238] sm:$0xff]
        %v391 = vld [vmem:[#allocation5 + $0x240] sm:$0xff]
        %v392 = vld [vmem:[#allocation5 + $0x248] sm:$0xff]
        %v393 = vld [vmem:[#allocation5 + $0x250] sm:$0xff]
        %v394 = vld [vmem:[#allocation5 + $0x258] sm:$0xff]
        %v395 = vld [vmem:[#allocation5 + $0x260] sm:$0xff]
        %v396 = vld [vmem:[#allocation5 + $0x268] sm:$0xff]
        %v397 = vld [vmem:[#allocation5 + $0x270] sm:$0xff]
        %v398 = vld [vmem:[#allocation5 + $0x278] sm:$0xff]
        %v399 = vld [vmem:[#allocation5 + $0x280] sm:$0xff]
        %v400 = vld [vmem:[#allocation5 + $0x288] sm:$0xff]
        %v401 = vld [vmem:[#allocation5 + $0x290] sm:$0xff]
        %v402 = vld [vmem:[#allocation5 + $0x298] sm:$0xff]
        %v403 = vld [vmem:[#allocation5 + $0x2a0] sm:$0xff]
        %v404 = vld [vmem:[#allocation5 + $0x2a8] sm:$0xff]
        %v405 = vld [vmem:[#allocation5 + $0x2b0] sm:$0xff]
        %v406 = vld [vmem:[#allocation5 + $0x2b8] sm:$0xff]
        %v407 = vld [vmem:[#allocation5 + $0x2c0] sm:$0xff]
        %v408 = vld [vmem:[#allocation5 + $0x2c8] sm:$0xff]
        %v409 = vld [vmem:[#allocation5 + $0x2d0] sm:$0xff]
        %v410 = vld [vmem:[#allocation5 + $0x2d8] sm:$0xff]
        %v411 = vld [vmem:[#allocation5 + $0x2e0] sm:$0xff]
        %v412 = vld [vmem:[#allocation5 + $0x2e8] sm:$0xff]
        %v413 = vld [vmem:[#allocation5 + $0x2f0] sm:$0xff]
        %v414 = vld [vmem:[#allocation5 + $0x2f8] sm:$0xff]
        %v415 = vld [vmem:[#allocation5 + $0x300] sm:$0xff]
        %v416 = vld [vmem:[#allocation5 + $0x308] sm:$0xff]
        %v417 = vld [vmem:[#allocation5 + $0x310] sm:$0xff]
        %v418 = vld [vmem:[#allocation5 + $0x318] sm:$0xff]
        %v419 = vld [vmem:[#allocation5 + $0x320] sm:$0xff]
        %v420 = vld [vmem:[#allocation5 + $0x328] sm:$0xff]
        %v421 = vld [vmem:[#allocation5 + $0x330] sm:$0xff]
        %v422 = vld [vmem:[#allocation5 + $0x338] sm:$0xff]
        %v423 = vld [vmem:[#allocation5 + $0x340] sm:$0xff]
        %v424 = vld [vmem:[#allocation5 + $0x348] sm:$0xff]
        %v425 = vld [vmem:[#allocation5 + $0x350] sm:$0xff]
        %v426 = vld [vmem:[#allocation5 + $0x358] sm:$0xff]
        %v427 = vld [vmem:[#allocation5 + $0x360] sm:$0xff]
        %v428 = vld [vmem:[#allocation5 + $0x368] sm:$0xff]
        %v429 = vld [vmem:[#allocation5 + $0x370] sm:$0xff]
        %v430 = vld [vmem:[#allocation5 + $0x378] sm:$0xff]
        %v431 = vld [vmem:[#allocation5 + $0x380] sm:$0xff]
        %v432 = vld [vmem:[#allocation5 + $0x388] sm:$0xff]
        %v433 = vld [vmem:[#allocation5 + $0x390] sm:$0xff]
        %v434 = vld [vmem:[#allocation5 + $0x398] sm:$0xff]
        %v435 = vld [vmem:[#allocation5 + $0x3a0] sm:$0xff]
        %v436 = vld [vmem:[#allocation5 + $0x3a8] sm:$0xff]
        %v437 = vld [vmem:[#allocation5 + $0x3b0] sm:$0xff]
        %v438 = vld [vmem:[#allocation5 + $0x3b8] sm:$0xff]
        %v439 = vld [vmem:[#allocation5 + $0x3c0] sm:$0xff]
        %v440 = vld [vmem:[#allocation5 + $0x3c8] sm:$0xff]
        %v441 = vld [vmem:[#allocation5 + $0x3d0] sm:$0xff]
        %v442 = vld [vmem:[#allocation5 + $0x3d8] sm:$0xff]
        %v443 = vld [vmem:[#allocation5 + $0x3e0] sm:$0xff]
        %v444 = vld [vmem:[#allocation5 + $0x3e8] sm:$0xff]
        %v445 = vld [vmem:[#allocation5 + $0x3f0] sm:$0xff]
        %v446 = vld [vmem:[#allocation5 + $0x3f8] sm:$0xff]
        %v447 = vld [vmem:[#allocation7] sm:$0xf]
        %v449 = vperm.slane %v447, 0
        %v450 = vperm.slane %v447, 1
        %v451 = vperm.slane %v447, 2
        %v452 = vperm.slane %v447, 3
        %457 = vmatpush.msra.mxu0 %v379
        %458 = vmatpush.msra.mxu0 %v375
        %459 = vmatpush.msra.mxu0 %v371
        %460 = vmatpush.msra.mxu0 %v367
        %461 = vmatpush.msra.mxu0 %v363
        %462 = vmatpush.msra.mxu0 %v359
        %463 = vmatpush.msra.mxu0 %v355
        %464 = vmatpush.msra.mxu0 %v351
        %465 = vmatpush.msra.mxu0 %v347
        %466 = vmatpush.msra.mxu0 %v343
        %467 = vmatpush.msra.mxu0 %v339
        %468 = vmatpush.msra.mxu0 %v335
        %469 = vmatpush.msra.mxu0 %v331
        %470 = vmatpush.msra.mxu0 %v327
        %471 = vmatpush.msra.mxu0 %v323
        %472 = vmatpush.msra.mxu0 %v319
        %473 = vmatmul.f32.gmra.mxu0 %v313
        %v474 = vpop.f32.mrf.mxu0
        %v475 = vadd.f32 %v449, %v474
        %476 = vmatmul.f32.gmra.mxu0 %v315
        %v477 = vpop.f32.mrf.mxu0
        %v478 = vadd.f32 %v449, %v477
        %479 = vmatmul.f32.gmra.mxu0 %v317
        %v480 = vpop.f32.mrf.mxu0
        %v481 = vadd.f32 %v449, %v480
        %482 = vdwg.mxu0
        %483 = vmatpush.msra.mxu0 %v443
        %484 = vmatpush.msra.mxu0 %v439
        %485 = vmatpush.msra.mxu0 %v435
        %486 = vmatpush.msra.mxu0 %v431
        %487 = vmatpush.msra.mxu0 %v427
        %488 = vmatpush.msra.mxu0 %v423
        %489 = vmatpush.msra.mxu0 %v419
        %490 = vmatpush.msra.mxu0 %v415
        %491 = vmatpush.msra.mxu0 %v411
        %492 = vmatpush.msra.mxu0 %v407
        %493 = vmatpush.msra.mxu0 %v403
        %494 = vmatpush.msra.mxu0 %v399
        %495 = vmatpush.msra.mxu0 %v395
        %496 = vmatpush.msra.mxu0 %v391
        %497 = vmatpush.msra.mxu0 %v387
        %498 = vmatpush.msra.mxu0 %v383
        %499 = vmatmul.f32.gmra.mxu0 %v314
        %v500 = vpop.f32.mrf.mxu0
        %v501 = vadd.f32 %v475, %v500
        %502 = vmatmul.f32.gmra.mxu0 %v316
        %v503 = vpop.f32.mrf.mxu0
        %v504 = vadd.f32 %v478, %v503
        %505 = vmatmul.f32.gmra.mxu0 %v318
        %v506 = vpop.f32.mrf.mxu0
        %v507 = vadd.f32 %v481, %v506
        %508 = vdwg.mxu0
        %509 = vmatpush.msra.mxu0 %v380
        %510 = vmatpush.msra.mxu0 %v376
        %511 = vmatpush.msra.mxu0 %v372
        %512 = vmatpush.msra.mxu0 %v368
        %513 = vmatpush.msra.mxu0 %v364
        %514 = vmatpush.msra.mxu0 %v360
        %515 = vmatpush.msra.mxu0 %v356
        %516 = vmatpush.msra.mxu0 %v352
        %517 = vmatpush.msra.mxu0 %v348
        %518 = vmatpush.msra.mxu0 %v344
        %519 = vmatpush.msra.mxu0 %v340
        %520 = vmatpush.msra.mxu0 %v336
        %521 = vmatpush.msra.mxu0 %v332
        %522 = vmatpush.msra.mxu0 %v328
        %523 = vmatpush.msra.mxu0 %v324
        %524 = vmatpush.msra.mxu0 %v320
        %525 = vmatmul.f32.gmra.mxu0 %v313
        %v526 = vpop.f32.mrf.mxu0
        %v527 = vadd.f32 %v450, %v526
        %528 = vmatmul.f32.gmra.mxu0 %v315
        %v529 = vpop.f32.mrf.mxu0
        %v530 = vadd.f32 %v450, %v529
        %531 = vmatmul.f32.gmra.mxu0 %v317
        %v532 = vpop.f32.mrf.mxu0
        %v533 = vadd.f32 %v450, %v532
        %534 = vdwg.mxu0
        %535 = vmatpush.msra.mxu0 %v444
        %536 = vmatpush.msra.mxu0 %v440
        %537 = vmatpush.msra.mxu0 %v436
        %538 = vmatpush.msra.mxu0 %v432
        %539 = vmatpush.msra.mxu0 %v428
        %540 = vmatpush.msra.mxu0 %v424
        %541 = vmatpush.msra.mxu0 %v420
        %542 = vmatpush.msra.mxu0 %v416
        %543 = vmatpush.msra.mxu0 %v412
        %544 = vmatpush.msra.mxu0 %v408
        %545 = vmatpush.msra.mxu0 %v404
        %546 = vmatpush.msra.mxu0 %v400
        %547 = vmatpush.msra.mxu0 %v396
        %548 = vmatpush.msra.mxu0 %v392
        %549 = vmatpush.msra.mxu0 %v388
        %550 = vmatpush.msra.mxu0 %v384
        %551 = vmatmul.f32.gmra.mxu0 %v314
        %v552 = vpop.f32.mrf.mxu0
        %v553 = vadd.f32 %v527, %v552
        %554 = vmatmul.f32.gmra.mxu0 %v316
        %v555 = vpop.f32.mrf.mxu0
        %v556 = vadd.f32 %v530, %v555
        %557 = vmatmul.f32.gmra.mxu0 %v318
        %v558 = vpop.f32.mrf.mxu0
        %v559 = vadd.f32 %v533, %v558
        %560 = vdwg.mxu0
        %561 = vmatpush.msra.mxu0 %v381
        %562 = vmatpush.msra.mxu0 %v377
        %563 = vmatpush.msra.mxu0 %v373
        %564 = vmatpush.msra.mxu0 %v369
        %565 = vmatpush.msra.mxu0 %v365
        %566 = vmatpush.msra.mxu0 %v361
        %567 = vmatpush.msra.mxu0 %v357
        %568 = vmatpush.msra.mxu0 %v353
        %569 = vmatpush.msra.mxu0 %v349
        %570 = vmatpush.msra.mxu0 %v345
        %571 = vmatpush.msra.mxu0 %v341
        %572 = vmatpush.msra.mxu0 %v337
        %573 = vmatpush.msra.mxu0 %v333
        %574 = vmatpush.msra.mxu0 %v329
        %575 = vmatpush.msra.mxu0 %v325
        %576 = vmatpush.msra.mxu0 %v321
        %577 = vmatmul.f32.gmra.mxu0 %v313
        %v578 = vpop.f32.mrf.mxu0
        %v579 = vadd.f32 %v451, %v578
        %580 = vmatmul.f32.gmra.mxu0 %v315
        %v581 = vpop.f32.mrf.mxu0
        %v582 = vadd.f32 %v451, %v581
        %583 = vmatmul.f32.gmra.mxu0 %v317
        %v584 = vpop.f32.mrf.mxu0
        %v585 = vadd.f32 %v451, %v584
        %586 = vdwg.mxu0
        %587 = vmatpush.msra.mxu0 %v445
        %588 = vmatpush.msra.mxu0 %v441
        %589 = vmatpush.msra.mxu0 %v437
        %590 = vmatpush.msra.mxu0 %v433
        %591 = vmatpush.msra.mxu0 %v429
        %592 = vmatpush.msra.mxu0 %v425
        %593 = vmatpush.msra.mxu0 %v421
        %594 = vmatpush.msra.mxu0 %v417
        %595 = vmatpush.msra.mxu0 %v413
        %596 = vmatpush.msra.mxu0 %v409
        %597 = vmatpush.msra.mxu0 %v405
        %598 = vmatpush.msra.mxu0 %v401
        %599 = vmatpush.msra.mxu0 %v397
        %600 = vmatpush.msra.mxu0 %v393
        %601 = vmatpush.msra.mxu0 %v389
        %602 = vmatpush.msra.mxu0 %v385
        %603 = vmatmul.f32.gmra.mxu0 %v314
        %v604 = vpop.f32.mrf.mxu0
        %v605 = vadd.f32 %v579, %v604
        %606 = vmatmul.f32.gmra.mxu0 %v316
        %v607 = vpop.f32.mrf.mxu0
        %v608 = vadd.f32 %v582, %v607
        %609 = vmatmul.f32.gmra.mxu0 %v318
        %v610 = vpop.f32.mrf.mxu0
        %v611 = vadd.f32 %v585, %v610
        %612 = vdwg.mxu0
        %613 = vmatpush.msra.mxu0 %v382
        %614 = vmatpush.msra.mxu0 %v378
        %615 = vmatpush.msra.mxu0 %v374
        %616 = vmatpush.msra.mxu0 %v370
        %617 = vmatpush.msra.mxu0 %v366
        %618 = vmatpush.msra.mxu0 %v362
        %619 = vmatpush.msra.mxu0 %v358
        %620 = vmatpush.msra.mxu0 %v354
        %621 = vmatpush.msra.mxu0 %v350
        %622 = vmatpush.msra.mxu0 %v346
        %623 = vmatpush.msra.mxu0 %v342
        %624 = vmatpush.msra.mxu0 %v338
        %625 = vmatpush.msra.mxu0 %v334
        %626 = vmatpush.msra.mxu0 %v330
        %627 = vmatpush.msra.mxu0 %v326
        %628 = vmatpush.msra.mxu0 %v322
        %629 = vmatmul.f32.gmra.mxu0 %v313
        %v630 = vpop.f32.mrf.mxu0
        %v631 = vadd.f32 %v452, %v630
        %632 = vmatmul.f32.gmra.mxu0 %v315
        %v633 = vpop.f32.mrf.mxu0
        %v634 = vadd.f32 %v452, %v633
        %635 = vmatmul.f32.gmra.mxu0 %v317
        %v636 = vpop.f32.mrf.mxu0
        %v637 = vadd.f32 %v452, %v636
        %638 = vdwg.mxu0
        %639 = vmatpush.msra.mxu0 %v446
        %640 = vmatpush.msra.mxu0 %v442
        %641 = vmatpush.msra.mxu0 %v438
        %642 = vmatpush.msra.mxu0 %v434
        %643 = vmatpush.msra.mxu0 %v430
        %644 = vmatpush.msra.mxu0 %v426
        %645 = vmatpush.msra.mxu0 %v422
        %646 = vmatpush.msra.mxu0 %v418
        %647 = vmatpush.msra.mxu0 %v414
        %648 = vmatpush.msra.mxu0 %v410
        %649 = vmatpush.msra.mxu0 %v406
        %650 = vmatpush.msra.mxu0 %v402
        %651 = vmatpush.msra.mxu0 %v398
        %652 = vmatpush.msra.mxu0 %v394
        %653 = vmatpush.msra.mxu0 %v390
        %654 = vmatpush.msra.mxu0 %v386
        %655 = vmatmul.f32.gmra.mxu0 %v314
        %v656 = vpop.f32.mrf.mxu0
        %v657 = vadd.f32 %v631, %v656
        %658 = vmatmul.f32.gmra.mxu0 %v316
        %v659 = vpop.f32.mrf.mxu0
        %v660 = vadd.f32 %v634, %v659
        %661 = vmatmul.f32.gmra.mxu0 %v318
        %v662 = vpop.f32.mrf.mxu0
        %v663 = vadd.f32 %v637, %v662
        %664 = vdwg.mxu0
        %v665 = vtanh.pop %v501
        %v666 = vtanh.pop %v553
        %v667 = vtanh.pop %v605
        %v668 = vtanh.pop %v657
        %v669 = vtanh.pop %v504
        %v670 = vtanh.pop %v556
        %v671 = vtanh.pop %v608
        %v672 = vtanh.pop %v660
        %v673 = vtanh.pop %v507
        %v674 = vtanh.pop %v559
        %v675 = vtanh.pop %v611
        %v676 = vtanh.pop %v663
        %v677 = vld [vmem:[#allocation8] sm:$0xff]
        %v678 = vld [vmem:[#allocation8 + $0x8] sm:$0xff]
        %v679 = vld [vmem:[#allocation8 + $0x10] sm:$0xff]
        %v680 = vld [vmem:[#allocation8 + $0x18] sm:$0xff]
        %v681 = vld [vmem:[#allocation8 + $0x20] sm:$0xff]
        %v682 = vld [vmem:[#allocation8 + $0x28] sm:$0xff]
        %v683 = vld [vmem:[#allocation8 + $0x30] sm:$0xff]
        %v684 = vld [vmem:[#allocation8 + $0x38] sm:$0xff]
        %v685 = vld [vmem:[#allocation8 + $0x40] sm:$0xff]
        %v686 = vld [vmem:[#allocation8 + $0x48] sm:$0xff]
        %v687 = vld [vmem:[#allocation8 + $0x50] sm:$0xff]
        %v688 = vld [vmem:[#allocation8 + $0x58] sm:$0xff]
        %v689 = vld [vmem:[#allocation8 + $0x60] sm:$0xff]
        %v690 = vld [vmem:[#allocation8 + $0x68] sm:$0xff]
        %v691 = vld [vmem:[#allocation8 + $0x70] sm:$0xff]
        %v692 = vld [vmem:[#allocation8 + $0x78] sm:$0xff]
        %v693 = vld [vmem:[#allocation8 + $0x80] sm:$0xff]
        %v694 = vld [vmem:[#allocation8 + $0x88] sm:$0xff]
        %v695 = vld [vmem:[#allocation8 + $0x90] sm:$0xff]
        %v696 = vld [vmem:[#allocation8 + $0x98] sm:$0xff]
        %v697 = vld [vmem:[#allocation8 + $0xa0] sm:$0xff]
        %v698 = vld [vmem:[#allocation8 + $0xa8] sm:$0xff]
        %v699 = vld [vmem:[#allocation8 + $0xb0] sm:$0xff]
        %v700 = vld [vmem:[#allocation8 + $0xb8] sm:$0xff]
        %v701 = vld [vmem:[#allocation8 + $0xc0] sm:$0xff]
        %v702 = vld [vmem:[#allocation8 + $0xc8] sm:$0xff]
        %v703 = vld [vmem:[#allocation8 + $0xd0] sm:$0xff]
        %v704 = vld [vmem:[#allocation8 + $0xd8] sm:$0xff]
        %v705 = vld [vmem:[#allocation8 + $0xe0] sm:$0xff]
        %v706 = vld [vmem:[#allocation8 + $0xe8] sm:$0xff]
        %v707 = vld [vmem:[#allocation8 + $0xf0] sm:$0xff]
        %v708 = vld [vmem:[#allocation8 + $0xf8] sm:$0xff]
        %v709 = vld [vmem:[#allocation8 + $0x100] sm:$0xff]
        %v710 = vld [vmem:[#allocation8 + $0x108] sm:$0xff]
        %v711 = vld [vmem:[#allocation8 + $0x110] sm:$0xff]
        %v712 = vld [vmem:[#allocation8 + $0x118] sm:$0xff]
        %v713 = vld [vmem:[#allocation8 + $0x120] sm:$0xff]
        %v714 = vld [vmem:[#allocation8 + $0x128] sm:$0xff]
        %v715 = vld [vmem:[#allocation8 + $0x130] sm:$0xff]
        %v716 = vld [vmem:[#allocation8 + $0x138] sm:$0xff]
        %v717 = vld [vmem:[#allocation8 + $0x140] sm:$0xff]
        %v718 = vld [vmem:[#allocation8 + $0x148] sm:$0xff]
        %v719 = vld [vmem:[#allocation8 + $0x150] sm:$0xff]
        %v720 = vld [vmem:[#allocation8 + $0x158] sm:$0xff]
        %v721 = vld [vmem:[#allocation8 + $0x160] sm:$0xff]
        %v722 = vld [vmem:[#allocation8 + $0x168] sm:$0xff]
        %v723 = vld [vmem:[#allocation8 + $0x170] sm:$0xff]
        %v724 = vld [vmem:[#allocation8 + $0x178] sm:$0xff]
        %v725 = vld [vmem:[#allocation8 + $0x180] sm:$0xff]
        %v726 = vld [vmem:[#allocation8 + $0x188] sm:$0xff]
        %v727 = vld [vmem:[#allocation8 + $0x190] sm:$0xff]
        %v728 = vld [vmem:[#allocation8 + $0x198] sm:$0xff]
        %v729 = vld [vmem:[#allocation8 + $0x1a0] sm:$0xff]
        %v730 = vld [vmem:[#allocation8 + $0x1a8] sm:$0xff]
        %v731 = vld [vmem:[#allocation8 + $0x1b0] sm:$0xff]
        %v732 = vld [vmem:[#allocation8 + $0x1b8] sm:$0xff]
        %v733 = vld [vmem:[#allocation8 + $0x1c0] sm:$0xff]
        %v734 = vld [vmem:[#allocation8 + $0x1c8] sm:$0xff]
        %v735 = vld [vmem:[#allocation8 + $0x1d0] sm:$0xff]
        %v736 = vld [vmem:[#allocation8 + $0x1d8] sm:$0xff]
        %v737 = vld [vmem:[#allocation8 + $0x1e0] sm:$0xff]
        %v738 = vld [vmem:[#allocation8 + $0x1e8] sm:$0xff]
        %v739 = vld [vmem:[#allocation8 + $0x1f0] sm:$0xff]
        %v740 = vld [vmem:[#allocation8 + $0x1f8] sm:$0xff]
        %v741 = vld [vmem:[%s4] sm:$0x1]
        %v743 = vperm.slane %v741, 0
        %745 = vmatpush.msra.mxu0 %v692
        %746 = vmatpush.msra.mxu0 %v691
        %747 = vmatpush.msra.mxu0 %v690
        %748 = vmatpush.msra.mxu0 %v689
        %749 = vmatpush.msra.mxu0 %v688
        %750 = vmatpush.msra.mxu0 %v687
        %751 = vmatpush.msra.mxu0 %v686
        %752 = vmatpush.msra.mxu0 %v685
        %753 = vmatpush.msra.mxu0 %v684
        %754 = vmatpush.msra.mxu0 %v683
        %755 = vmatpush.msra.mxu0 %v682
        %756 = vmatpush.msra.mxu0 %v681
        %757 = vmatpush.msra.mxu0 %v680
        %758 = vmatpush.msra.mxu0 %v679
        %759 = vmatpush.msra.mxu0 %v678
        %760 = vmatpush.msra.mxu0 %v677
        %761 = vmatmul.f32.gmra.mxu0 %v665
        %v762 = vpop.f32.mrf.mxu0
        %v763 = vadd.f32 %v743, %v762
        %764 = vmatmul.f32.gmra.mxu0 %v669
        %v765 = vpop.f32.mrf.mxu0
        %v766 = vadd.f32 %v743, %v765
        %767 = vmatmul.f32.gmra.mxu0 %v673
        %v768 = vpop.f32.mrf.mxu0
        %v769 = vadd.f32 %v743, %v768
        %770 = vdwg.mxu0
        %771 = vmatpush.msra.mxu0 %v708
        %772 = vmatpush.msra.mxu0 %v707
        %773 = vmatpush.msra.mxu0 %v706
        %774 = vmatpush.msra.mxu0 %v705
        %775 = vmatpush.msra.mxu0 %v704
        %776 = vmatpush.msra.mxu0 %v703
        %777 = vmatpush.msra.mxu0 %v702
        %778 = vmatpush.msra.mxu0 %v701
        %779 = vmatpush.msra.mxu0 %v700
        %780 = vmatpush.msra.mxu0 %v699
        %781 = vmatpush.msra.mxu0 %v698
        %782 = vmatpush.msra.mxu0 %v697
        %783 = vmatpush.msra.mxu0 %v696
        %784 = vmatpush.msra.mxu0 %v695
        %785 = vmatpush.msra.mxu0 %v694
        %786 = vmatpush.msra.mxu0 %v693
        %787 = vmatmul.f32.gmra.mxu0 %v666
        %v788 = vpop.f32.mrf.mxu0
        %v789 = vadd.f32 %v763, %v788
        %790 = vmatmul.f32.gmra.mxu0 %v670
        %v791 = vpop.f32.mrf.mxu0
        %v792 = vadd.f32 %v766, %v791
        %793 = vmatmul.f32.gmra.mxu0 %v674
        %v794 = vpop.f32.mrf.mxu0
        %v795 = vadd.f32 %v769, %v794
        %796 = vdwg.mxu0
        %797 = vmatpush.msra.mxu0 %v724
        %798 = vmatpush.msra.mxu0 %v723
        %799 = vmatpush.msra.mxu0 %v722
        %800 = vmatpush.msra.mxu0 %v721
        %801 = vmatpush.msra.mxu0 %v720
        %802 = vmatpush.msra.mxu0 %v719
        %803 = vmatpush.msra.mxu0 %v718
        %804 = vmatpush.msra.mxu0 %v717
        %805 = vmatpush.msra.mxu0 %v716
        %806 = vmatpush.msra.mxu0 %v715
        %807 = vmatpush.msra.mxu0 %v714
        %808 = vmatpush.msra.mxu0 %v713
        %809 = vmatpush.msra.mxu0 %v712
        %810 = vmatpush.msra.mxu0 %v711
        %811 = vmatpush.msra.mxu0 %v710
        %812 = vmatpush.msra.mxu0 %v709
        %813 = vmatmul.f32.gmra.mxu0 %v667
        %v814 = vpop.f32.mrf.mxu0
        %v815 = vadd.f32 %v789, %v814
        %816 = vmatmul.f32.gmra.mxu0 %v671
        %v817 = vpop.f32.mrf.mxu0
        %v818 = vadd.f32 %v792, %v817
        %819 = vmatmul.f32.gmra.mxu0 %v675
        %v820 = vpop.f32.mrf.mxu0
        %v821 = vadd.f32 %v795, %v820
        %822 = vdwg.mxu0
        %823 = vmatpush.msra.mxu0 %v740
        %824 = vmatpush.msra.mxu0 %v739
        %825 = vmatpush.msra.mxu0 %v738
        %826 = vmatpush.msra.mxu0 %v737
        %827 = vmatpush.msra.mxu0 %v736
        %828 = vmatpush.msra.mxu0 %v735
        %829 = vmatpush.msra.mxu0 %v734
        %830 = vmatpush.msra.mxu0 %v733
        %831 = vmatpush.msra.mxu0 %v732
        %832 = vmatpush.msra.mxu0 %v731
        %833 = vmatpush.msra.mxu0 %v730
        %834 = vmatpush.msra.mxu0 %v729
        %835 = vmatpush.msra.mxu0 %v728
        %836 = vmatpush.msra.mxu0 %v727
        %837 = vmatpush.msra.mxu0 %v726
        %838 = vmatpush.msra.mxu0 %v725
        %839 = vmatmul.f32.gmra.mxu0 %v668
        %v840 = vpop.f32.mrf.mxu0
        %v841 = vadd.f32 %v815, %v840
        %842 = vmatmul.f32.gmra.mxu0 %v672
        %v843 = vpop.f32.mrf.mxu0
        %v844 = vadd.f32 %v818, %v843
        %845 = vmatmul.f32.gmra.mxu0 %v676
        %v846 = vpop.f32.mrf.mxu0
        %v847 = vadd.f32 %v821, %v846
        %848 = vdwg.mxu0
        %849 = vst [vmem:[%s301] sm:$0xff] %v841
        %850 = vst [vmem:[%s301 + $0x8] sm:$0xff] %v844
        %851 = vst [vmem:[%s301 + $0x10] sm:$0xff] %v847
        %s852 = sand.u32 %s142, 1
        %s853 = scalar_lea.sflag [#allocation4], %s852
        %s854 = sand.u32 %s142, 1
        %s855 = smul.addr %s854, 24
        %s856 = scalar_lea.vmem [#allocation10], %s855
        // Predicated region
        $region57: #{tpu_custom_call.1} parent=39 // pred_check
          %p857 = pneg %p152
        $region58: #{tpu_custom_call.1} parent=39 // pred_check_branch
          %859 = sbr.rel (%p857) target = $region60
        $region59: #{tpu_custom_call.1} parent=39 // pred_region
          %s860 = smul.u32 3, %s24
          %s861 = ssub.s32 5, %s860
          %p862 = scmp.lt.s32.totalorder %s861, 3
          %s863 = scalar_select %p862, %s861, 3
          %s864 = smul.u32 8, %s863
          %s865 = ssub.s32 24, %s864
          %s866 = sshll.u32 %s865, 4
          %867 = vsyncadd %s853, %s866
          %p868 = scmp.ne.s32.totalorder 0, %s864
          %s869 = smul.addr %s860, 8
          %s870 = scalar_lea.hbm %s5, %s869
          %s871 = smul.u32 8, %s863
          %s872 = sshll.u32 %s856, 4
          %s873 = int_to_ptr.vmem [resolvable:$true] %s872
          %s874 = sshll.u32 %s870, 4
          %s875 = int_to_ptr.hbm [resolvable:$true] %s874
          %s876 = sshll.u32 %s871, 4
          %880 = dma.vmem_to_hbm [thread:$0]  (%p868), %s873, %s876, %s875, %s853, 128, 128, 8
        $region60: #{tpu_custom_call.1} parent=39 // pred_fallthru
          _
      $region40: #{tpu_custom_call.1} parent=5 // pred_fallthru
        _
      %p881 = scmp.le.s32.totalorder 2, %s19
      // Predicated region
      $region61: #{tpu_custom_call.1} parent=5 // pred_check
        %p882 = pneg %p881
      $region62: #{tpu_custom_call.1} parent=5 // pred_check_branch
        %884 = sbr.rel (%p882) target = $region64
      $region63: #{tpu_custom_call.1} parent=5 // pred_region
        %s885 = ssub.s32 %s19, 2
        // Predicated region
        $region65: #{tpu_custom_call.1} parent=63 // pred_check
          %p886 = pneg %p158
        $region66: #{tpu_custom_call.1} parent=63 // pred_check_branch
          %888 = sbr.rel (%p886) target = $region68
        $region67: #{tpu_custom_call.1} parent=63 // pred_region
          %s889 = sand.u32 %s143, 1
          %s890 = scalar_lea.sflag [#allocation4], %s889
          %s891 = sand.u32 %s143, 1
          %s892 = smul.addr %s891, 24
          %s893 = scalar_lea.vmem [#allocation10], %s892
          %895 = dma.done %s890, 384
        $region68: #{tpu_custom_call.1} parent=63 // pred_fallthru
          _
      $region64: #{tpu_custom_call.1} parent=5 // pred_fallthru
        _
    $region6: #{tpu_custom_call.1} parent=1 // loop_footer
      %s23 = sadd.s32 1, %s19
    $region7: #{tpu_custom_call.1} parent=1 // loop_footer_branch
      %18 = sbr.rel target = $region3
    $region8: #{tpu_custom_call.1} parent=1 // loop_exit
      _
    %896 = vsyncpa [#allocation3], 1
    %s897 = scalar_lea.sflag [#allocation3], 1
    %898 = vsyncpa %s897, 1
    %899 = vsyncpa [#allocation6], 1
    %900 = vsyncpa [#allocation9], 1
    %901 = vsyncpa [#allocation4], 1
    %s902 = scalar_lea.sflag [#allocation4], 1
    %903 = vsyncpa %s902, 1

</llo_original>
